<compile_context>
chip_gen: v5e
topology: v5e:2x2
jax: 0.10.0
libtpu: 0.0.40
codegen_flags: <defaults>
</compile_context>

<pallas_src>
import functools

import jax
import jax.numpy as jnp
from jax.experimental import pallas as pl
from jax.experimental.pallas import tpu as pltpu

_VMEM_LIMIT = 32 * 1024 * 1024  # safe on v5e/v6e/v7x; raise tiles within this


# ----------------------------------------------------------------------------
# Kernel 1: fused residual-add + RMSNorm (prenorm, fp32 residual) + QKV proj.
# Grid: (M // tm, D // tn); the normalized activations are computed once per
# row-tile (j == 0), kept in a VMEM scratch, and reused for every N tile of
# the three projections.  The fp32 residual output block is revisited across
# the j axis and written only once.
# ----------------------------------------------------------------------------
def _norm_qkv_kernel(*refs, eps, has_residual):
    if has_residual:
        (x_ref, res_ref, w_ref, wq_ref, wk_ref, wv_ref,
         q_ref, k_ref, v_ref, resid_ref, y_sc) = refs
    else:
        (x_ref, w_ref, wq_ref, wk_ref, wv_ref,
         q_ref, k_ref, v_ref, resid_ref, y_sc) = refs
        res_ref = None

    @pl.when(pl.program_id(1) == 0)
    def _():
        x = x_ref[...].astype(jnp.float32)
        if has_residual:
            x = x + res_ref[...].astype(jnp.float32)
        ms = jnp.mean(x * x, axis=-1, keepdims=True)
        y = x * jax.lax.rsqrt(ms + eps) * w_ref[...].astype(jnp.float32)
        resid_ref[...] = x          # residual_in_fp32 = True
        y_sc[...] = y

    y = y_sc[...].astype(wq_ref.dtype)
    q_ref[...] = jnp.dot(y, wq_ref[...],
                         preferred_element_type=jnp.float32).astype(q_ref.dtype)
    k_ref[...] = jnp.dot(y, wk_ref[...],
                         preferred_element_type=jnp.float32).astype(k_ref.dtype)
    v_ref[...] = jnp.dot(y, wv_ref[...],
                         preferred_element_type=jnp.float32).astype(v_ref.dtype)


def fused_norm_qkv(x2d, res2d, norm_w, wq_t, wk_t, wv_t, eps,
                   *, tm=256, tn=512, out_dtype=None):
    M, D = x2d.shape
    out_dtype = out_dtype or x2d.dtype
    tm = min(tm, M)
    tn = min(tn, D)
    assert M % tm == 0 and D % tn == 0, "pick tiles dividing (M, D)"
    has_residual = res2d is not None

    row_spec = pl.BlockSpec((tm, D), lambda i, j: (i, 0))
    in_specs = [row_spec]
    ins = [x2d]
    if has_residual:
        in_specs.append(row_spec)
        ins.append(res2d)
    in_specs += [
        pl.BlockSpec((1, D), lambda i, j: (0, 0)),      # norm weight
        pl.BlockSpec((D, tn), lambda i, j: (0, j)),     # Wq^T tile
        pl.BlockSpec((D, tn), lambda i, j: (0, j)),     # Wk^T tile
        pl.BlockSpec((D, tn), lambda i, j: (0, j)),     # Wv^T tile
    ]
    ins += [norm_w.reshape(1, D), wq_t, wk_t, wv_t]

    out_specs = (
        pl.BlockSpec((tm, tn), lambda i, j: (i, j)),    # q
        pl.BlockSpec((tm, tn), lambda i, j: (i, j)),    # k
        pl.BlockSpec((tm, tn), lambda i, j: (i, j)),    # v
        pl.BlockSpec((tm, D), lambda i, j: (i, 0)),     # residual (fp32)
    )
    out_shape = (
        jax.ShapeDtypeStruct((M, D), out_dtype),
        jax.ShapeDtypeStruct((M, D), out_dtype),
        jax.ShapeDtypeStruct((M, D), out_dtype),
        jax.ShapeDtypeStruct((M, D), jnp.float32),
    )
    return pl.pallas_call(
        functools.partial(_norm_qkv_kernel, eps=eps, has_residual=has_residual),
        grid=(M // tm, D // tn),
        in_specs=in_specs,
        out_specs=out_specs,
        out_shape=out_shape,
        scratch_shapes=[pltpu.VMEM((tm, D), jnp.float32)],
        compiler_params=pltpu.CompilerParams(
            dimension_semantics=("parallel", "arbitrary"),
            vmem_limit_bytes=_VMEM_LIMIT),
    )(*ins)


# ----------------------------------------------------------------------------
# Kernel 2: chunked ("fused_chunk") hedgehog causal linear attention.
#   phi(x) = softmax(concat([2h, -2h]))  computed as a single (Lc, 2*Dh)
#   feature matrix (scale folded into q features).
#   For chunk c and head h:
#     o = tril(qf @ kf^T) @ v  +  qf @ S[h]        (intra + inter chunk)
#     S[h] += kf^T @ v                             (state carried in VMEM)
# Activations stay head-interleaved [B, L, H*Dh]; all heads of one (b, chunk)
# are processed per grid step and the output store is a lane-dense (Lc, D).
# ----------------------------------------------------------------------------
def _hedgehog_fused_chunk_kernel(q_ref, k_ref, v_ref,
                                 wfq_ref, bfq_ref, wfk_ref, bfk_ref,
                                 o_ref, state_ref, *, scale, n_head):
    @pl.when(pl.program_id(1) == 0)
    def _():
        state_ref[...] = jnp.zeros_like(state_ref)

    q = q_ref[0]                      # (Lc, D)
    k = k_ref[0]
    v = v_ref[0]
    Lc, D = q.shape
    Dh = D // n_head

    wfq = wfq_ref[...].astype(jnp.float32)
    bfq = bfq_ref[...].astype(jnp.float32)
    wfk = wfk_ref[...].astype(jnp.float32)
    bfk = bfk_ref[...].astype(jnp.float32)

    row = jax.lax.broadcasted_iota(jnp.int32, (Lc, Lc), 0)
    col = jax.lax.broadcasted_iota(jnp.int32, (Lc, Lc), 1)
    causal = col <= row

    def hedgehog(x, w_t, b):
        # x: (Lc, Dh) fp32 -> (Lc, 2*Dh) normalized features
        h = jnp.dot(x, w_t, preferred_element_type=jnp.float32) + b
        m = jnp.maximum(jnp.max(2.0 * h, axis=-1, keepdims=True),
                        jnp.max(-2.0 * h, axis=-1, keepdims=True))
        ep = jnp.exp(2.0 * h - m)
        en = jnp.exp(-2.0 * h - m)
        z = (jnp.sum(ep, axis=-1, keepdims=True)
             + jnp.sum(en, axis=-1, keepdims=True))
        rz = pl.reciprocal(z, approx=True)          # EUP, not VALU divides
        return jnp.concatenate([ep, en], axis=-1) * rz

    dn_qkT = (((1,), (1,)), ((), ()))   # (Lc,2Dh) x (Lc,2Dh) -> (Lc, Lc)
    dn_kTv = (((0,), (0,)), ((), ()))   # (Lc,2Dh) x (Lc,Dh)  -> (2Dh, Dh)

    outs = []
    for h_idx in range(n_head):
        sl = slice(h_idx * Dh, (h_idx + 1) * Dh)
        qh = q[:, sl].astype(jnp.float32)
        kh = k[:, sl].astype(jnp.float32)
        vh = v[:, sl].astype(jnp.float32)

        qf = hedgehog(qh, wfq, bfq) * scale          # scale folded into q
        kf = hedgehog(kh, wfk, bfk)

        s = jax.lax.dot_general(qf, kf, dn_qkT,
                                preferred_element_type=jnp.float32)
        s = jnp.where(causal, s, 0.0)

        S = state_ref[h_idx]                         # (2*Dh, Dh) fp32
        o_h = (jnp.dot(s, vh, preferred_element_type=jnp.float32)
               + jnp.dot(qf, S, preferred_element_type=jnp.float32))
        state_ref[h_idx] = S + jax.lax.dot_general(
            kf, vh, dn_kTv, preferred_element_type=jnp.float32)
        outs.append(o_h)

    o_ref[0] = jnp.concatenate(outs, axis=-1).astype(o_ref.dtype)


def hedgehog_linear_attention(q, k, v, wfq_t, bfq, wfk_t, bfk, scale, n_head,
                              *, chunk=128, out_dtype=None):
    B, L, D = q.shape
    Dh = D // n_head
    lc = min(chunk, L)
    assert L % lc == 0, "chunk must divide L"
    out_dtype = out_dtype or q.dtype

    blk = pl.BlockSpec((1, lc, D), lambda b, c: (b, c, 0))
    wspec = pl.BlockSpec((Dh, Dh), lambda b, c: (0, 0))
    bspec = pl.BlockSpec((1, Dh), lambda b, c: (0, 0))

    return pl.pallas_call(
        functools.partial(_hedgehog_fused_chunk_kernel,
                          scale=scale, n_head=n_head),
        grid=(B, L // lc),
        in_specs=[blk, blk, blk, wspec, bspec, wspec, bspec],
        out_specs=blk,
        out_shape=jax.ShapeDtypeStruct((B, L, D), out_dtype),
        scratch_shapes=[pltpu.VMEM((n_head, 2 * Dh, Dh), jnp.float32)],
        compiler_params=pltpu.CompilerParams(
            dimension_semantics=("parallel", "arbitrary"),
            vmem_limit_bytes=_VMEM_LIMIT),
    )(q, k, v, wfq_t, bfq.reshape(1, Dh), wfk_t, bfk.reshape(1, Dh))


# ----------------------------------------------------------------------------
# Kernel 3: tiled matmul for the output projection (fp32 VMEM accumulator,
# K as the innermost "arbitrary" reduction axis).
# ----------------------------------------------------------------------------
def _matmul_kernel(x_ref, w_ref, o_ref, acc_ref):
    @pl.when(pl.program_id(2) == 0)
    def _():
        acc_ref[...] = jnp.zeros_like(acc_ref)
    acc_ref[...] += jnp.dot(x_ref[...], w_ref[...],
                            preferred_element_type=jnp.float32)
    @pl.when(pl.program_id(2) == pl.num_programs(2) - 1)
    def _():
        o_ref[...] = acc_ref[...].astype(o_ref.dtype)


def pallas_matmul(x, w_t, *, tm=256, tn=256, tk=512, out_dtype=None):
    M, K = x.shape
    _, N = w_t.shape
    out_dtype = out_dtype or x.dtype
    tm = min(tm, M)
    tn = min(tn, N)
    tk = min(tk, K)
    assert M % tm == 0 and N % tn == 0 and K % tk == 0
    return pl.pallas_call(
        _matmul_kernel,
        grid=(M // tm, N // tn, K // tk),
        in_specs=[pl.BlockSpec((tm, tk), lambda i, j, kk: (i, kk)),
                  pl.BlockSpec((tk, tn), lambda i, j, kk: (kk, j))],
        out_specs=pl.BlockSpec((tm, tn), lambda i, j, kk: (i, j)),
        out_shape=jax.ShapeDtypeStruct((M, N), out_dtype),
        scratch_shapes=[pltpu.VMEM((tm, tn), jnp.float32)],
        compiler_params=pltpu.CompilerParams(
            dimension_semantics=("parallel", "parallel", "arbitrary"),
            vmem_limit_bytes=_VMEM_LIMIT),
    )(x, w_t)


# ----------------------------------------------------------------------------
# Wrapper == LinearAttentionWrapper.forward (train/prefill path:
# fused_add_norm=True, residual_in_fp32=True, rms_norm=True,
# feature_map='hedgehog', output_norm='identity', mode='fused_chunk').
# ----------------------------------------------------------------------------
def linear_attention_wrapper_forward(params, hidden_states, residual=None,
                                     *, chunk=128):
    B, L, D = hidden_states.shape
    H = params["n_head"]
    Dh = D // H
    scale = (2 * Dh) ** -0.5    # fla convention: phi(q).shape[-1] ** -0.5

    M = B * L
    x2d = hidden_states.reshape(M, D)
    res2d = None if residual is None else residual.reshape(M, D)

    # fused add + RMSNorm + QKV projection (activations read once)
    q2d, k2d, v2d, resid2d = fused_norm_qkv(
        x2d, res2d, params["norm_weight"],
        params["Wq"].T, params["Wk"].T, params["Wv"].T, params["eps"])

    q = q2d.reshape(B, L, D)
    k = k2d.reshape(B, L, D)
    v = v2d.reshape(B, L, D)

    # chunked hedgehog causal linear attention (head-interleaved layout)
    o = hedgehog_linear_attention(
        q, k, v,
        params["Wfq"].T, params["bfq"], params["Wfk"].T, params["bfk"],
        scale, H, chunk=chunk)

    # output projection
    out = pallas_matmul(o.reshape(M, D), params["Wo"].T).reshape(B, L, D)
    resid = resid2d.reshape(B, L, D)

    # TODO(synk): inference_params / 'fused_recurrent' decode path with cached
    # recurrent state is not implemented (prefill / training path only).
    return out, resid


# ----------------------------------------------------------------------------
# Pure-JAX reference (sanity check of the Pallas kernels)
# ----------------------------------------------------------------------------
def reference_forward(params, x, residual=None):
    B, L, D = x.shape
    H = params["n_head"]
    Dh = D // H
    scale = (2 * Dh) ** -0.5

    resid = x.astype(jnp.float32) if residual is None \
        else (x + residual).astype(jnp.float32)
    ms = jnp.mean(resid * resid, axis=-1, keepdims=True)
    y = resid * jax.lax.rsqrt(ms + params["eps"]) * params["norm_weight"]

    def proj(W):
        return (y.reshape(B * L, D) @ W.T).reshape(B, L, H, Dh).transpose(0, 2, 1, 3)

    q, k, v = proj(params["Wq"]), proj(params["Wk"]), proj(params["Wv"])

    def feat(t, W, b):
        h = t @ W.T + b
        return jax.nn.softmax(jnp.concatenate([2 * h, -2 * h], axis=-1), axis=-1)

    qf = feat(q, params["Wfq"], params["bfq"]) * scale
    kf = feat(k, params["Wfk"], params["bfk"])
    s = jnp.einsum("bhqd,bhkd->bhqk", qf, kf)
    mask = jnp.tril(jnp.ones((L, L), dtype=bool))
    s = jnp.where(mask, s, 0.0)
    o = jnp.einsum("bhqk,bhkd->bhqd", s, v)
    o = o.transpose(0, 2, 1, 3).reshape(B * L, D) @ params["Wo"].T
    return o.reshape(B, L, D), resid


# ----------------------------------------------------------------------------
# Deterministic synthetic parameters + run
# ----------------------------------------------------------------------------
def make_params(key, d_model, n_head, eps=1e-5):
    Dh = d_model // n_head
    ks = jax.random.split(key, 8)
    sd = 1.0 / jnp.sqrt(d_model)
    return {
        "n_head": n_head,
        "eps": eps,
        "norm_weight": jnp.ones((d_model,), jnp.float32),
        "Wq": jax.random.normal(ks[0], (d_model, d_model), jnp.float32) * sd,
        "Wk": jax.random.normal(ks[1], (d_model, d_model), jnp.float32) * sd,
        "Wv": jax.random.normal(ks[2], (d_model, d_model), jnp.float32) * sd,
        "Wo": jax.random.normal(ks[3], (d_model, d_model), jnp.float32) * sd,
        # Hedgehog feature-map layers: identity init + tiny perturbation.
        "Wfq": jnp.eye(Dh, dtype=jnp.float32)
               + 0.02 * jax.random.normal(ks[4], (Dh, Dh), jnp.float32),
        "bfq": jnp.zeros((Dh,), jnp.float32),
        "Wfk": jnp.eye(Dh, dtype=jnp.float32)
               + 0.02 * jax.random.normal(ks[5], (Dh, Dh), jnp.float32),
        "bfk": jnp.zeros((Dh,), jnp.float32),
    }


if __name__ == "__main__":
    B, L, d_model, n_head = 2, 16, 32, 4

    key = jax.random.PRNGKey(0)
    kp, kx, kr = jax.random.split(key, 3)
    params = make_params(kp, d_model, n_head)
    x = jax.random.normal(kx, (B, L, d_model), jnp.float32)
    res_in = jax.random.normal(kr, (B, L, d_model), jnp.float32)

    # chunk=8 with L=16 -> 2 causal chunks: exercises the carried VMEM state.
    out, resid = linear_attention_wrapper_forward(params, x, residual=None, chunk=8)
    out = jax.block_until_ready(out)
    resid = jax.block_until_ready(resid)
    ref_out, ref_resid = reference_forward(params, x, residual=None)
    assert out.shape == (B, L, d_model) and resid.shape == (B, L, d_model)
    assert jnp.allclose(resid, ref_resid, atol=1e-5, rtol=1e-5), "residual mismatch"
    assert jnp.allclose(out, ref_out, atol=2e-3, rtol=1e-2), "attention mismatch"

    # residual path (separate static variant, no zeros materialized above).
    out2, resid2 = linear_attention_wrapper_forward(params, x, residual=res_in, chunk=8)
    out2 = jax.block_until_ready(out2)
    resid2 = jax.block_until_ready(resid2)
    ref_out2, ref_resid2 = reference_forward(params, x, residual=res_in)
    assert jnp.allclose(resid2, ref_resid2, atol=1e-5, rtol=1e-5), "residual mismatch (res path)"
    assert jnp.allclose(out2, ref_out2, atol=2e-3, rtol=1e-2), "attention mismatch (res path)"

    print("KERNEL_OK")
</pallas_src>

<mosaic_0001>
module attributes {stable_mosaic.version = 11 : i64} {
  func.func @_norm_qkv_kernel(%arg0: i32, %arg1: i32, %arg2: memref<32x32xf32, #tpu.memory_space<vmem>>, %arg3: memref<1x32xf32, #tpu.memory_space<vmem>>, %arg4: memref<32x32xf32, #tpu.memory_space<vmem>>, %arg5: memref<32x32xf32, #tpu.memory_space<vmem>>, %arg6: memref<32x32xf32, #tpu.memory_space<vmem>>, %arg7: memref<32x32xf32, #tpu.memory_space<vmem>>, %arg8: memref<32x32xf32, #tpu.memory_space<vmem>>, %arg9: memref<32x32xf32, #tpu.memory_space<vmem>>, %arg10: memref<32x32xf32, #tpu.memory_space<vmem>>, %arg11: memref<32x32xf32, #tpu.memory_space<vmem>>) attributes {dimension_semantics = [#tpu.dimension_semantics<parallel>, #tpu.dimension_semantics<arbitrary>], iteration_bounds = array<i64: 1, 1>, scalar_prefetch = 0 : i64, scratch_operands = 1 : i64, tpu.core_type = #tpu.core_type<tc>, window_params = [{transform_indices = @transform_0, window_bounds = array<i64: 32, 32>}, {pipeline_mode = #tpu.pipeline_mode<synchronous>, transform_indices = @transform_1, window_bounds = array<i64: 1, 32>}, {transform_indices = @transform_2, window_bounds = array<i64: 32, 32>}, {transform_indices = @transform_3, window_bounds = array<i64: 32, 32>}, {transform_indices = @transform_4, window_bounds = array<i64: 32, 32>}, {transform_indices = @transform_5, window_bounds = array<i64: 32, 32>}, {transform_indices = @transform_6, window_bounds = array<i64: 32, 32>}, {transform_indices = @transform_7, window_bounds = array<i64: 32, 32>}, {transform_indices = @transform_8, window_bounds = array<i64: 32, 32>}]} {
    %c0_i32 = arith.constant 0 : i32
    %0 = arith.cmpi eq, %arg1, %c0_i32 : i32
    %1 = arith.extui %0 : i1 to i32
    %c0_i32_0 = arith.constant 0 : i32
    %2 = arith.cmpi ne, %1, %c0_i32_0 : i32
    scf.if %2 {
      %c0_16 = arith.constant 0 : index
      %c0_17 = arith.constant 0 : index
      %13 = vector.load %arg2[%c0_16, %c0_17] : memref<32x32xf32, #tpu.memory_space<vmem>>, vector<32x32xf32>
      %14 = arith.mulf %13, %13 : vector<32x32xf32>
      %cst_18 = arith.constant dense<0.000000e+00> : vector<32xf32>
      %15 = vector.multi_reduction <add>, %14, %cst_18 [1] : vector<32x32xf32> to vector<32xf32>
      %16 = vector.shape_cast %15 : vector<32xf32> to vector<32x1xf32>
      %cst_19 = arith.constant 3.200000e+01 : f32
      %17 = vector.broadcast %cst_19 : f32 to vector<32x1xf32>
      %18 = arith.divf %16, %17 : vector<32x1xf32>
      %cst_20 = arith.constant 9.99999974E-6 : f32
      %19 = vector.broadcast %cst_20 : f32 to vector<32x1xf32>
      %20 = arith.addf %18, %19 : vector<32x1xf32>
      %21 = math.rsqrt %20 : vector<32x1xf32>
      %22 = vector.broadcast %21 : vector<32x1xf32> to vector<32x32xf32>
      %23 = arith.mulf %13, %22 : vector<32x32xf32>
      %c0_21 = arith.constant 0 : index
      %c0_22 = arith.constant 0 : index
      %24 = vector.load %arg3[%c0_21, %c0_22] : memref<1x32xf32, #tpu.memory_space<vmem>>, vector<1x32xf32>
      %25 = vector.broadcast %24 : vector<1x32xf32> to vector<32x32xf32>
      %26 = arith.mulf %23, %25 : vector<32x32xf32>
      %c0_23 = arith.constant 0 : index
      %c0_24 = arith.constant 0 : index
      %27 = vector.load %arg10[%c0_23, %c0_24] : memref<32x32xf32, #tpu.memory_space<vmem>>, vector<32x32xf32>
      tpu.vector_store %arg10[%c0_23, %c0_24], %13 {strides = array<i32>} : memref<32x32xf32, #tpu.memory_space<vmem>>, vector<32x32xf32>,
      %c0_25 = arith.constant 0 : index
      %c0_26 = arith.constant 0 : index
      %28 = vector.load %arg11[%c0_25, %c0_26] : memref<32x32xf32, #tpu.memory_space<vmem>>, vector<32x32xf32>
      tpu.vector_store %arg11[%c0_25, %c0_26], %26 {strides = array<i32>} : memref<32x32xf32, #tpu.memory_space<vmem>>, vector<32x32xf32>,
    } else {
    }
    %c0 = arith.constant 0 : index
    %c0_1 = arith.constant 0 : index
    %3 = vector.load %arg11[%c0, %c0_1] : memref<32x32xf32, #tpu.memory_space<vmem>>, vector<32x32xf32>
    %c0_2 = arith.constant 0 : index
    %c0_3 = arith.constant 0 : index
    %4 = vector.load %arg4[%c0_2, %c0_3] : memref<32x32xf32, #tpu.memory_space<vmem>>, vector<32x32xf32>
    %cst = arith.constant dense<0.000000e+00> : vector<32x32xf32>
    %5 = tpu.matmul %3, %4, %cst {dimension_numbers = #tpu.dot_dimension_numbers<[1], [0], [0], [1], [0, 0, 1, 1], [], []>} : vector<32x32xf32>, vector<32x32xf32>, vector<32x32xf32> -> vector<32x32xf32>
    %c0_4 = arith.constant 0 : index
    %c0_5 = arith.constant 0 : index
    %6 = vector.load %arg7[%c0_4, %c0_5] : memref<32x32xf32, #tpu.memory_space<vmem>>, vector<32x32xf32>
    tpu.vector_store %arg7[%c0_4, %c0_5], %5 {strides = array<i32>} : memref<32x32xf32, #tpu.memory_space<vmem>>, vector<32x32xf32>,
    %c0_6 = arith.constant 0 : index
    %c0_7 = arith.constant 0 : index
    %7 = vector.load %arg5[%c0_6, %c0_7] : memref<32x32xf32, #tpu.memory_space<vmem>>, vector<32x32xf32>
    %cst_8 = arith.constant dense<0.000000e+00> : vector<32x32xf32>
    %8 = tpu.matmul %3, %7, %cst_8 {dimension_numbers = #tpu.dot_dimension_numbers<[1], [0], [0], [1], [0, 0, 1, 1], [], []>} : vector<32x32xf32>, vector<32x32xf32>, vector<32x32xf32> -> vector<32x32xf32>
    %c0_9 = arith.constant 0 : index
    %c0_10 = arith.constant 0 : index
    %9 = vector.load %arg8[%c0_9, %c0_10] : memref<32x32xf32, #tpu.memory_space<vmem>>, vector<32x32xf32>
    tpu.vector_store %arg8[%c0_9, %c0_10], %8 {strides = array<i32>} : memref<32x32xf32, #tpu.memory_space<vmem>>, vector<32x32xf32>,
    %c0_11 = arith.constant 0 : index
    %c0_12 = arith.constant 0 : index
    %10 = vector.load %arg6[%c0_11, %c0_12] : memref<32x32xf32, #tpu.memory_space<vmem>>, vector<32x32xf32>
    %cst_13 = arith.constant dense<0.000000e+00> : vector<32x32xf32>
    %11 = tpu.matmul %3, %10, %cst_13 {dimension_numbers = #tpu.dot_dimension_numbers<[1], [0], [0], [1], [0, 0, 1, 1], [], []>} : vector<32x32xf32>, vector<32x32xf32>, vector<32x32xf32> -> vector<32x32xf32>
    %c0_14 = arith.constant 0 : index
    %c0_15 = arith.constant 0 : index
    %12 = vector.load %arg9[%c0_14, %c0_15] : memref<32x32xf32, #tpu.memory_space<vmem>>, vector<32x32xf32>
    tpu.vector_store %arg9[%c0_14, %c0_15], %11 {strides = array<i32>} : memref<32x32xf32, #tpu.memory_space<vmem>>, vector<32x32xf32>,
    return
  }
  func.func @transform_0(%arg0: i32, %arg1: i32) -> (i32, i32) {
    %c0_i32 = arith.constant 0 : i32
    %c0_i32_0 = arith.constant 0 : i32
    return %arg0, %c0_i32 : i32, i32
  }
  func.func @transform_1(%arg0: i32, %arg1: i32) -> (i32, i32) {
    %c0_i32 = arith.constant 0 : i32
    %c0_i32_0 = arith.constant 0 : i32
    %c0_i32_1 = arith.constant 0 : i32
    return %c0_i32, %c0_i32_0 : i32, i32
  }
  func.func @transform_2(%arg0: i32, %arg1: i32) -> (i32, i32) {
    %c0_i32 = arith.constant 0 : i32
    %c0_i32_0 = arith.constant 0 : i32
    return %c0_i32, %arg1 : i32, i32
  }
  func.func @transform_3(%arg0: i32, %arg1: i32) -> (i32, i32) {
    %c0_i32 = arith.constant 0 : i32
    %c0_i32_0 = arith.constant 0 : i32
    return %c0_i32, %arg1 : i32, i32
  }
  func.func @transform_4(%arg0: i32, %arg1: i32) -> (i32, i32) {
    %c0_i32 = arith.constant 0 : i32
    %c0_i32_0 = arith.constant 0 : i32
    return %c0_i32, %arg1 : i32, i32
  }
  func.func @transform_5(%arg0: i32, %arg1: i32) -> (i32, i32) {
    %c0_i32 = arith.constant 0 : i32
    return %arg0, %arg1 : i32, i32
  }
  func.func @transform_6(%arg0: i32, %arg1: i32) -> (i32, i32) {
    %c0_i32 = arith.constant 0 : i32
    return %arg0, %arg1 : i32, i32
  }
  func.func @transform_7(%arg0: i32, %arg1: i32) -> (i32, i32) {
    %c0_i32 = arith.constant 0 : i32
    return %arg0, %arg1 : i32, i32
  }
  func.func @transform_8(%arg0: i32, %arg1: i32) -> (i32, i32) {
    %c0_i32 = arith.constant 0 : i32
    %c0_i32_0 = arith.constant 0 : i32
    return %arg0, %c0_i32 : i32, i32
  }
}

</mosaic_0001>

<llo_original>
// kernel: tpu_custom_call.1
$region0: #{tpu_custom_call.1}
  #allocation0 [shape = 'u32[]', space=smem, size = 0x4, offset = 0x4, fixed_abs, tag = 'smem constant byte address 0x4 - core index']
  #allocation1 [shape = 'u32[72,128]{1,0:T(1,128)}', space=vmem, size = 0x9000, scoped, tag = 'internal scratch']
  #allocation2 [shape = 'f32[32,32]{1,0:T(8,128)}', space=vmem, size = 0x4000, scoped, tag = 'scratch operand']
  %s0 = inlined_call_operand.hbm [shape: f32[32,32], index: 0, kind: input, shape index: {}]
  %s1 = inlined_call_operand.hbm [shape: f32[1,32], index: 1, kind: input, shape index: {}]
  %s2 = inlined_call_operand.hbm [shape: f32[32,32], index: 2, kind: input, shape index: {}]
  %s3 = inlined_call_operand.hbm [shape: f32[32,32], index: 3, kind: input, shape index: {}]
  %s4 = inlined_call_operand.hbm [shape: f32[32,32], index: 4, kind: input, shape index: {}]
  %s5 = inlined_call_operand.hbm [shape: f32[32,32], index: 5, kind: output, shape index: {0}]
  %s6 = inlined_call_operand.hbm [shape: f32[32,32], index: 6, kind: output, shape index: {1}]
  %s7 = inlined_call_operand.hbm [shape: f32[32,32], index: 7, kind: output, shape index: {2}]
  %s8 = inlined_call_operand.hbm [shape: f32[32,32], index: 8, kind: output, shape index: {3}]
  %9 = xla_tuple %s5, %s6, %s7, %s8
  %s10 = sld [smem:[#allocation0]]
  $region78: #{tpu_custom_call.1} parent=0
    _
  %s12 = ssub.s32 1, %s10
  %s13 = scalar_select 0, %s12, %s10
  $region1: #{tpu_custom_call.1} parent=0
    #allocation3 [shape = 'u8[16384]{0}', space=vmem, size = 0x4000, scoped, tag = 'input window, operand 0, single buffered']
    #allocation4 [shape = 's32[1]{0}', space=sflag, size = 0x4, scoped, tag = 'scoped memory for tpu_custom_call.1']
    #allocation5 [shape = 's32[1]{0}', space=sflag, size = 0x4, scoped, tag = 'scoped memory for tpu_custom_call.1']
    #allocation6 [shape = 'u8[512]{0}', space=vmem, size = 0x400, scoped, tag = 'input window, operand 1, single buffered']
    #allocation7 [shape = 's32[1]{0}', space=sflag, size = 0x4, scoped, tag = 'scoped memory for tpu_custom_call.1']
    #allocation8 [shape = 'u8[16384]{0}', space=vmem, size = 0x4000, scoped, tag = 'input window, operand 2, single buffered']
    #allocation9 [shape = 'u8[16384]{0}', space=vmem, size = 0x4000, scoped, tag = 'input window, operand 3, single buffered']
    #allocation10 [shape = 's32[1]{0}', space=sflag, size = 0x4, scoped, tag = 'scoped memory for tpu_custom_call.1']
    #allocation11 [shape = 'u8[16384]{0}', space=vmem, size = 0x4000, scoped, tag = 'input window, operand 4, single buffered']
    #allocation12 [shape = 'u8[16384]{0}', space=vmem, size = 0x4000, scoped, tag = 'output window, operand 0, single buffered']
    #allocation13 [shape = 'u8[16384]{0}', space=vmem, size = 0x4000, scoped, tag = 'output window, operand 1, single buffered']
    #allocation14 [shape = 's32[1]{0}', space=sflag, size = 0x4, scoped, tag = 'scoped memory for tpu_custom_call.1']
    #allocation15 [shape = 'u8[16384]{0}', space=vmem, size = 0x4000, scoped, tag = 'output window, operand 2, single buffered']
    #allocation16 [shape = 'u8[16384]{0}', space=vmem, size = 0x4000, scoped, tag = 'output window, operand 3, single buffered']
    #allocation17 [shape = 's32[1]{0}', space=sflag, size = 0x4, scoped, tag = 'scoped memory for tpu_custom_call.1']
    %14 = vsyncpa [#allocation4], 0
    %15 = vsyncpa [#allocation7], 0
    %16 = vsyncpa [#allocation10], 0
    %17 = vsyncpa [#allocation5], 0
    %18 = vsyncpa [#allocation14], 0
    %19 = vsyncpa [#allocation17], 0
    // Predicated region
    $region2: #{tpu_custom_call.1} parent=1 // pred_check
      _
    $region3: #{tpu_custom_call.1} parent=1 // pred_check_branch
      %21 = sbr.rel (0) target = $region5
    $region4: #{tpu_custom_call.1} parent=1 // pred_region
      %23 = vsyncadd [#allocation4], 0
      %s24 = sshll.u32 %s0, 4
      %s25 = int_to_ptr.hbm [resolvable:$true] %s24
      %s26 = sshll.u32 [#allocation3], 4
      %s27 = int_to_ptr.vmem [resolvable:$true] %s26
      %32 = dma.hbm_to_vmem [thread:$0]  %s25, 512, %s27, [#allocation4], 128, 128, 8
    $region5: #{tpu_custom_call.1} parent=1 // pred_fallthru
      _
    // Predicated region
    $region6: #{tpu_custom_call.1} parent=1 // pred_check
      _
    $region7: #{tpu_custom_call.1} parent=1 // pred_check_branch
      %34 = sbr.rel (0) target = $region9
    $region8: #{tpu_custom_call.1} parent=1 // pred_region
      %36 = vsyncadd [#allocation7], 0
      %s38 = sshll.u32 %s1, 4
      %s39 = int_to_ptr.hbm [resolvable:$true] %s38
      %s40 = sshll.u32 [#allocation6], 4
      %s41 = int_to_ptr.vmem [resolvable:$true] %s40
      %43 = dma.hbm_to_vmem [thread:$0]  %s39, 16, %s41, [#allocation7]
    $region9: #{tpu_custom_call.1} parent=1 // pred_fallthru
      _
    // Predicated region
    $region10: #{tpu_custom_call.1} parent=1 // pred_check
      _
    $region11: #{tpu_custom_call.1} parent=1 // pred_check_branch
      %45 = sbr.rel (0) target = $region13
    $region12: #{tpu_custom_call.1} parent=1 // pred_region
      %47 = vsyncadd [#allocation7], 0
      %s48 = sshll.u32 %s2, 4
      %s49 = int_to_ptr.hbm [resolvable:$true] %s48
      %s50 = sshll.u32 [#allocation8], 4
      %s51 = int_to_ptr.vmem [resolvable:$true] %s50
      %56 = dma.hbm_to_vmem [thread:$0]  %s49, 512, %s51, [#allocation7], 128, 128, 8
    $region13: #{tpu_custom_call.1} parent=1 // pred_fallthru
      _
    // Predicated region
    $region14: #{tpu_custom_call.1} parent=1 // pred_check
      _
    $region15: #{tpu_custom_call.1} parent=1 // pred_check_branch
      %58 = sbr.rel (0) target = $region17
    $region16: #{tpu_custom_call.1} parent=1 // pred_region
      %60 = vsyncadd [#allocation10], 0
      %s61 = sshll.u32 %s3, 4
      %s62 = int_to_ptr.hbm [resolvable:$true] %s61
      %s63 = sshll.u32 [#allocation9], 4
      %s64 = int_to_ptr.vmem [resolvable:$true] %s63
      %69 = dma.hbm_to_vmem [thread:$0]  %s62, 512, %s64, [#allocation10], 128, 128, 8
    $region17: #{tpu_custom_call.1} parent=1 // pred_fallthru
      _
    // Predicated region
    $region18: #{tpu_custom_call.1} parent=1 // pred_check
      _
    $region19: #{tpu_custom_call.1} parent=1 // pred_check_branch
      %71 = sbr.rel (0) target = $region21
    $region20: #{tpu_custom_call.1} parent=1 // pred_region
      %73 = vsyncadd [#allocation10], 0
      %s74 = sshll.u32 %s4, 4
      %s75 = int_to_ptr.hbm [resolvable:$true] %s74
      %s76 = sshll.u32 [#allocation11], 4
      %s77 = int_to_ptr.vmem [resolvable:$true] %s76
      %82 = dma.hbm_to_vmem [thread:$0]  %s75, 512, %s77, [#allocation10], 128, 128, 8
    $region21: #{tpu_custom_call.1} parent=1 // pred_fallthru
      _
    // Predicated region
    $region22: #{tpu_custom_call.1} parent=1 // pred_check
      _
    $region23: #{tpu_custom_call.1} parent=1 // pred_check_branch
      %84 = sbr.rel (0) target = $region25
    $region24: #{tpu_custom_call.1} parent=1 // pred_region
      %86 = dma.done [#allocation4], 512
    $region25: #{tpu_custom_call.1} parent=1 // pred_fallthru
      _
    // Predicated region
    $region26: #{tpu_custom_call.1} parent=1 // pred_check
      _
    $region27: #{tpu_custom_call.1} parent=1 // pred_check_branch
      %88 = sbr.rel (0) target = $region29
    $region28: #{tpu_custom_call.1} parent=1 // pred_region
      %90 = dma.done [#allocation7], 16
    $region29: #{tpu_custom_call.1} parent=1 // pred_fallthru
      _
    // Predicated region
    $region30: #{tpu_custom_call.1} parent=1 // pred_check
      _
    $region31: #{tpu_custom_call.1} parent=1 // pred_check_branch
      %92 = sbr.rel (0) target = $region33
    $region32: #{tpu_custom_call.1} parent=1 // pred_region
      %94 = dma.done [#allocation7], 512
    $region33: #{tpu_custom_call.1} parent=1 // pred_fallthru
      _
    // Predicated region
    $region34: #{tpu_custom_call.1} parent=1 // pred_check
      _
    $region35: #{tpu_custom_call.1} parent=1 // pred_check_branch
      %96 = sbr.rel (0) target = $region37
    $region36: #{tpu_custom_call.1} parent=1 // pred_region
      %98 = dma.done [#allocation10], 512
    $region37: #{tpu_custom_call.1} parent=1 // pred_fallthru
      _
    // Predicated region
    $region38: #{tpu_custom_call.1} parent=1 // pred_check
      _
    $region39: #{tpu_custom_call.1} parent=1 // pred_check_branch
      %100 = sbr.rel (0) target = $region41
    $region40: #{tpu_custom_call.1} parent=1 // pred_region
      %102 = dma.done [#allocation10], 512
    $region41: #{tpu_custom_call.1} parent=1 // pred_fallthru
      _
    %p103 = scmp.eq.s32.totalorder 0, 0
    // Predicated region
    $region42: #{tpu_custom_call.1} parent=1 // pred_check
      %p104 = pneg %p103
    $region43: #{tpu_custom_call.1} parent=1 // pred_check_branch
      %106 = sbr.rel (%p104) target = $region45
    $region44: #{tpu_custom_call.1} parent=1 // pred_region
      %v107 = vld [vmem:[#allocation3] sm:$0xff]
      %v108 = vld [vmem:[#allocation3 + $0x8] sm:$0xff]
      %v109 = vld [vmem:[#allocation3 + $0x10] sm:$0xff]
      %v110 = vld [vmem:[#allocation3 + $0x18] sm:$0xff]
      %v111 = vmul.f32 %v107, %v107
      %v112 = vmul.f32 %v108, %v108
      %v113 = vmul.f32 %v109, %v109
      %v114 = vmul.f32 %v110, %v110
      %vm115 = vcmask 261120
      %v116 = vsel %vm115, %v111, 0.0
      %117 = vadd.xlane.f32.xlu0 %v116
      %v118 = vpop.xlane.xlu0 %117
      %v119 = vsel %vm115, %v112, 0.0
      %120 = vadd.xlane.f32.xlu0 %v119
      %v121 = vpop.xlane.xlu0 %120
      %v122 = vsel %vm115, %v113, 0.0
      %123 = vadd.xlane.f32.xlu0 %v122
      %v124 = vpop.xlane.xlu0 %123
      %v125 = vsel %vm115, %v114, 0.0
      %126 = vadd.xlane.f32.xlu0 %v125
      %v127 = vpop.xlane.xlu0 %126
      %v128 = vrcp.pop 32.0
      %v129 = vmul.f32 32.0, %v128
      %v130 = vsub.f32 1.0, %v129
      %v131 = vmul.f32 %v128, %v130
      %v132 = vadd.f32 %v128, %v131
      %vm133 = vweird.f32 %v128
      %v134 = vsel %vm133, %v128, %v132
      %v135 = vmul.f32 %v118, %v134
      %v136 = vmul.f32 %v121, %v134
      %v137 = vmul.f32 %v124, %v134
      %v138 = vmul.f32 %v127, %v134
      %v139 = vadd.f32 %v135, 1e-05
      %v140 = vadd.f32 %v136, 1e-05
      %v141 = vadd.f32 %v137, 1e-05
      %v142 = vadd.f32 %v138, 1e-05
      %v143 = vrsqrt.pop %v139
      %v144 = vmul.f32 %v143, %v139
      %v145 = vmul.f32 %v144, %v143
      %v146 = vmul.f32 0.5, %v145
      %v147 = vsub.f32 1.5, %v146
      %v148 = vmul.f32 %v143, %v147
      %vm149 = vweird.f32 %v139
      %vm150 = vweird.f32 %v143
      %vm151 = vmor %vm149, %vm150
      %v152 = vsel %vm151, %v143, %v148
      %v153 = vrsqrt.pop %v140
      %v154 = vmul.f32 %v153, %v140
      %v155 = vmul.f32 %v154, %v153
      %v156 = vmul.f32 0.5, %v155
      %v157 = vsub.f32 1.5, %v156
      %v158 = vmul.f32 %v153, %v157
      %vm159 = vweird.f32 %v140
      %vm160 = vweird.f32 %v153
      %vm161 = vmor %vm159, %vm160
      %v162 = vsel %vm161, %v153, %v158
      %v163 = vrsqrt.pop %v141
      %v164 = vmul.f32 %v163, %v141
      %v165 = vmul.f32 %v164, %v163
      %v166 = vmul.f32 0.5, %v165
      %v167 = vsub.f32 1.5, %v166
      %v168 = vmul.f32 %v163, %v167
      %vm169 = vweird.f32 %v141
      %vm170 = vweird.f32 %v163
      %vm171 = vmor %vm169, %vm170
      %v172 = vsel %vm171, %v163, %v168
      %v173 = vrsqrt.pop %v142
      %v174 = vmul.f32 %v173, %v142
      %v175 = vmul.f32 %v174, %v173
      %v176 = vmul.f32 0.5, %v175
      %v177 = vsub.f32 1.5, %v176
      %v178 = vmul.f32 %v173, %v177
      %vm179 = vweird.f32 %v142
      %vm180 = vweird.f32 %v173
      %vm181 = vmor %vm179, %vm180
      %v182 = vsel %vm181, %v173, %v178
      %v183 = vmul.f32 %v107, %v152
      %v184 = vmul.f32 %v108, %v162
      %v185 = vmul.f32 %v109, %v172
      %v186 = vmul.f32 %v110, %v182
      %v187 = vld [vmem:[#allocation6] sm:$0x1]
      %v189 = vperm.slane %v187, 0
      %v191 = vmul.f32 %v183, %v189
      %v192 = vmul.f32 %v184, %v189
      %v193 = vmul.f32 %v185, %v189
      %v194 = vmul.f32 %v186, %v189
      %195 = vst.msk [vmem:[#allocation16] sm:$0xff] %vm115, %v107
      %196 = vst.msk [vmem:[#allocation16 + $0x8] sm:$0xff] %vm115, %v108
      %197 = vst.msk [vmem:[#allocation16 + $0x10] sm:$0xff] %vm115, %v109
      %198 = vst.msk [vmem:[#allocation16 + $0x18] sm:$0xff] %vm115, %v110
      %199 = vst.msk [vmem:[#allocation2] sm:$0xff] %vm115, %v191
      %200 = vst.msk [vmem:[#allocation2 + $0x8] sm:$0xff] %vm115, %v192
      %201 = vst.msk [vmem:[#allocation2 + $0x10] sm:$0xff] %vm115, %v193
      %202 = vst.msk [vmem:[#allocation2 + $0x18] sm:$0xff] %vm115, %v194
    $region45: #{tpu_custom_call.1} parent=1 // pred_fallthru
      _
    %v203 = vld [vmem:[#allocation2] sm:$0xff]
    %v204 = vld [vmem:[#allocation2 + $0x8] sm:$0xff]
    %v205 = vld [vmem:[#allocation2 + $0x10] sm:$0xff]
    %v206 = vld [vmem:[#allocation2 + $0x18] sm:$0xff]
    %v207 = vld [vmem:[#allocation8] sm:$0xff]
    %v208 = vld [vmem:[#allocation8 + $0x8] sm:$0xff]
    %v209 = vld [vmem:[#allocation8 + $0x10] sm:$0xff]
    %v210 = vld [vmem:[#allocation8 + $0x18] sm:$0xff]
    %vm211 = vcmask 261120
    %v213 = vsel %vm211, %v203, 0
    %v216 = vsel %vm211, %v204, 0
    %v219 = vsel %vm211, %v205, 0
    %v222 = vsel %vm211, %v206, 0
    %224 = vmatpush.msra.mxu0 0.0
    %225 = vmatpush.msra.mxu0 0.0
    %226 = vmatpush.msra.mxu0 0.0
    %227 = vmatpush.msra.mxu0 0.0
    %228 = vmatpush.msra.mxu0 0.0
    %229 = vmatpush.msra.mxu0 0.0
    %230 = vmatpush.msra.mxu0 0.0
    %231 = vmatpush.msra.mxu0 0.0
    %232 = vmatpush.msra.mxu0 0.0
    %233 = vmatpush.msra.mxu0 0.0
    %234 = vmatpush.msra.mxu0 0.0
    %235 = vmatpush.msra.mxu0 0.0
    %236 = vmatpush.msra.mxu0 %v210
    %237 = vmatpush.msra.mxu0 %v209
    %238 = vmatpush.msra.mxu0 %v208
    %239 = vmatpush.msra.mxu0 %v207
    %240 = vmatmul.f32.gmra.mxu0 %v213
    %v241 = vpop.f32.mrf.mxu0
    %v242 = vadd.f32 0.0, %v241
    %243 = vmatmul.f32.gmra.mxu0 %v216
    %v244 = vpop.f32.mrf.mxu0
    %v245 = vadd.f32 0.0, %v244
    %246 = vmatmul.f32.gmra.mxu0 %v219
    %v247 = vpop.f32.mrf.mxu0
    %v248 = vadd.f32 0.0, %v247
    %249 = vmatmul.f32.gmra.mxu0 %v222
    %v250 = vpop.f32.mrf.mxu0
    %v251 = vadd.f32 0.0, %v250
    %252 = vdwg.mxu0
    %253 = vst.msk [vmem:[#allocation12] sm:$0xff] %vm211, %v242
    %254 = vst.msk [vmem:[#allocation12 + $0x8] sm:$0xff] %vm211, %v245
    %255 = vst.msk [vmem:[#allocation12 + $0x10] sm:$0xff] %vm211, %v248
    %256 = vst.msk [vmem:[#allocation12 + $0x18] sm:$0xff] %vm211, %v251
    %v257 = vld [vmem:[#allocation9] sm:$0xff]
    %v258 = vld [vmem:[#allocation9 + $0x8] sm:$0xff]
    %v259 = vld [vmem:[#allocation9 + $0x10] sm:$0xff]
    %v260 = vld [vmem:[#allocation9 + $0x18] sm:$0xff]
    %261 = vmatpush.msra.mxu0 0.0
    %262 = vmatpush.msra.mxu0 0.0
    %263 = vmatpush.msra.mxu0 0.0
    %264 = vmatpush.msra.mxu0 0.0
    %265 = vmatpush.msra.mxu0 0.0
    %266 = vmatpush.msra.mxu0 0.0
    %267 = vmatpush.msra.mxu0 0.0
    %268 = vmatpush.msra.mxu0 0.0
    %269 = vmatpush.msra.mxu0 0.0
    %270 = vmatpush.msra.mxu0 0.0
    %271 = vmatpush.msra.mxu0 0.0
    %272 = vmatpush.msra.mxu0 0.0
    %273 = vmatpush.msra.mxu0 %v260
    %274 = vmatpush.msra.mxu0 %v259
    %275 = vmatpush.msra.mxu0 %v258
    %276 = vmatpush.msra.mxu0 %v257
    %277 = vmatmul.f32.gmra.mxu0 %v213
    %v278 = vpop.f32.mrf.mxu0
    %v279 = vadd.f32 0.0, %v278
    %280 = vmatmul.f32.gmra.mxu0 %v216
    %v281 = vpop.f32.mrf.mxu0
    %v282 = vadd.f32 0.0, %v281
    %283 = vmatmul.f32.gmra.mxu0 %v219
    %v284 = vpop.f32.mrf.mxu0
    %v285 = vadd.f32 0.0, %v284
    %286 = vmatmul.f32.gmra.mxu0 %v222
    %v287 = vpop.f32.mrf.mxu0
    %v288 = vadd.f32 0.0, %v287
    %289 = vdwg.mxu0
    %290 = vst.msk [vmem:[#allocation13] sm:$0xff] %vm211, %v279
    %291 = vst.msk [vmem:[#allocation13 + $0x8] sm:$0xff] %vm211, %v282
    %292 = vst.msk [vmem:[#allocation13 + $0x10] sm:$0xff] %vm211, %v285
    %293 = vst.msk [vmem:[#allocation13 + $0x18] sm:$0xff] %vm211, %v288
    %v294 = vld [vmem:[#allocation11] sm:$0xff]
    %v295 = vld [vmem:[#allocation11 + $0x8] sm:$0xff]
    %v296 = vld [vmem:[#allocation11 + $0x10] sm:$0xff]
    %v297 = vld [vmem:[#allocation11 + $0x18] sm:$0xff]
    %298 = vmatpush.msra.mxu0 0.0
    %299 = vmatpush.msra.mxu0 0.0
    %300 = vmatpush.msra.mxu0 0.0
    %301 = vmatpush.msra.mxu0 0.0
    %302 = vmatpush.msra.mxu0 0.0
    %303 = vmatpush.msra.mxu0 0.0
    %304 = vmatpush.msra.mxu0 0.0
    %305 = vmatpush.msra.mxu0 0.0
    %306 = vmatpush.msra.mxu0 0.0
    %307 = vmatpush.msra.mxu0 0.0
    %308 = vmatpush.msra.mxu0 0.0
    %309 = vmatpush.msra.mxu0 0.0
    %310 = vmatpush.msra.mxu0 %v297
    %311 = vmatpush.msra.mxu0 %v296
    %312 = vmatpush.msra.mxu0 %v295
    %313 = vmatpush.msra.mxu0 %v294
    %314 = vmatmul.f32.gmra.mxu0 %v213
    %v315 = vpop.f32.mrf.mxu0
    %v316 = vadd.f32 0.0, %v315
    %317 = vmatmul.f32.gmra.mxu0 %v216
    %v318 = vpop.f32.mrf.mxu0
    %v319 = vadd.f32 0.0, %v318
    %320 = vmatmul.f32.gmra.mxu0 %v219
    %v321 = vpop.f32.mrf.mxu0
    %v322 = vadd.f32 0.0, %v321
    %323 = vmatmul.f32.gmra.mxu0 %v222
    %v324 = vpop.f32.mrf.mxu0
    %v325 = vadd.f32 0.0, %v324
    %326 = vdwg.mxu0
    %327 = vst.msk [vmem:[#allocation15] sm:$0xff] %vm211, %v316
    %328 = vst.msk [vmem:[#allocation15 + $0x8] sm:$0xff] %vm211, %v319
    %329 = vst.msk [vmem:[#allocation15 + $0x10] sm:$0xff] %vm211, %v322
    %330 = vst.msk [vmem:[#allocation15 + $0x18] sm:$0xff] %vm211, %v325
    // Predicated region
    $region46: #{tpu_custom_call.1} parent=1 // pred_check
      _
    $region47: #{tpu_custom_call.1} parent=1 // pred_check_branch
      %332 = sbr.rel (0) target = $region49
    $region48: #{tpu_custom_call.1} parent=1 // pred_region
      %334 = vsyncadd [#allocation5], 0
      %s335 = sshll.u32 [#allocation12], 4
      %s336 = int_to_ptr.vmem [resolvable:$true] %s335
      %s337 = sshll.u32 %s5, 4
      %s338 = int_to_ptr.hbm [resolvable:$true] %s337
      %343 = dma.vmem_to_hbm [thread:$0]  %s336, 512, %s338, [#allocation5], 128, 128, 8
    $region49: #{tpu_custom_call.1} parent=1 // pred_fallthru
      _
    // Predicated region
    $region50: #{tpu_custom_call.1} parent=1 // pred_check
      _
    $region51: #{tpu_custom_call.1} parent=1 // pred_check_branch
      %345 = sbr.rel (0) target = $region53
    $region52: #{tpu_custom_call.1} parent=1 // pred_region
      %347 = vsyncadd [#allocation14], 0
      %s348 = sshll.u32 [#allocation13], 4
      %s349 = int_to_ptr.vmem [resolvable:$true] %s348
      %s350 = sshll.u32 %s6, 4
      %s351 = int_to_ptr.hbm [resolvable:$true] %s350
      %356 = dma.vmem_to_hbm [thread:$0]  %s349, 512, %s351, [#allocation14], 128, 128, 8
    $region53: #{tpu_custom_call.1} parent=1 // pred_fallthru
      _
    // Predicated region
    $region54: #{tpu_custom_call.1} parent=1 // pred_check
      _
    $region55: #{tpu_custom_call.1} parent=1 // pred_check_branch
      %358 = sbr.rel (0) target = $region57
    $region56: #{tpu_custom_call.1} parent=1 // pred_region
      %360 = vsyncadd [#allocation14], 0
      %s361 = sshll.u32 [#allocation15], 4
      %s362 = int_to_ptr.vmem [resolvable:$true] %s361
      %s363 = sshll.u32 %s7, 4
      %s364 = int_to_ptr.hbm [resolvable:$true] %s363
      %369 = dma.vmem_to_hbm [thread:$0]  %s362, 512, %s364, [#allocation14], 128, 128, 8
    $region57: #{tpu_custom_call.1} parent=1 // pred_fallthru
      _
    // Predicated region
    $region58: #{tpu_custom_call.1} parent=1 // pred_check
      _
    $region59: #{tpu_custom_call.1} parent=1 // pred_check_branch
      %371 = sbr.rel (0) target = $region61
    $region60: #{tpu_custom_call.1} parent=1 // pred_region
      %373 = vsyncadd [#allocation17], 0
      %s374 = sshll.u32 [#allocation16], 4
      %s375 = int_to_ptr.vmem [resolvable:$true] %s374
      %s376 = sshll.u32 %s8, 4
      %s377 = int_to_ptr.hbm [resolvable:$true] %s376
      %382 = dma.vmem_to_hbm [thread:$0]  %s375, 512, %s377, [#allocation17], 128, 128, 8
    $region61: #{tpu_custom_call.1} parent=1 // pred_fallthru
      _
    // Predicated region
    $region62: #{tpu_custom_call.1} parent=1 // pred_check
      _
    $region63: #{tpu_custom_call.1} parent=1 // pred_check_branch
      %384 = sbr.rel (0) target = $region65
    $region64: #{tpu_custom_call.1} parent=1 // pred_region
      %386 = dma.done [#allocation5], 512
    $region65: #{tpu_custom_call.1} parent=1 // pred_fallthru
      _
    // Predicated region
    $region66: #{tpu_custom_call.1} parent=1 // pred_check
      _
    $region67: #{tpu_custom_call.1} parent=1 // pred_check_branch
      %388 = sbr.rel (0) target = $region69
    $region68: #{tpu_custom_call.1} parent=1 // pred_region
      %390 = dma.done [#allocation14], 512
    $region69: #{tpu_custom_call.1} parent=1 // pred_fallthru
      _
    // Predicated region
    $region70: #{tpu_custom_call.1} parent=1 // pred_check
      _
    $region71: #{tpu_custom_call.1} parent=1 // pred_check_branch
      %392 = sbr.rel (0) target = $region73
    $region72: #{tpu_custom_call.1} parent=1 // pred_region
      %394 = dma.done [#allocation14], 512
    $region73: #{tpu_custom_call.1} parent=1 // pred_fallthru
      _
    // Predicated region
    $region74: #{tpu_custom_call.1} parent=1 // pred_check
      _
    $region75: #{tpu_custom_call.1} parent=1 // pred_check_branch
      %396 = sbr.rel (0) target = $region77
    $region76: #{tpu_custom_call.1} parent=1 // pred_region
      %398 = dma.done [#allocation17], 512
    $region77: #{tpu_custom_call.1} parent=1 // pred_fallthru
      _
    %399 = vsyncpa [#allocation4], 1
    %400 = vsyncpa [#allocation7], 1
    %401 = vsyncpa [#allocation10], 1
    %402 = vsyncpa [#allocation5], 1
    %403 = vsyncpa [#allocation14], 1
    %404 = vsyncpa [#allocation17], 1

</llo_original>
